<compile_context>
chip_gen: v7x
topology: tpu7x:2x2x1
jax: 0.10.0
libtpu: 0.0.40
codegen_flags: <defaults>
</compile_context>

<pallas_src>
import functools

import jax
import jax.numpy as jnp
from jax.experimental import pallas as pl
from jax.experimental.pallas import tpu as pltpu


def _round_up(n, m):
    return (n + m - 1) // m * m


def mlp_kernel(x_ref, w1_ref, w2_ref, w3_ref, b_ref, o_ref):
    """Forward pass for one batch tile; all weights fully VMEM-resident."""
    x = x_ref[...]                      # bf16 (TB, IN)
    b1 = b_ref[0:1, :]                  # f32 (1, PAD)
    b2 = b_ref[1:2, :]
    b3 = b_ref[2:3, :]                  # padded classes hold -1e30

    # fc1 + relu (bf16 MXU inputs, f32 accumulation / elementwise)
    h1 = jnp.dot(x, w1_ref[...], preferred_element_type=jnp.float32) + b1
    h1 = jnp.maximum(h1, 0.0)

    # fc2 + relu
    h2 = jnp.dot(h1.astype(jnp.bfloat16), w2_ref[...],
                 preferred_element_type=jnp.float32) + b2
    h2 = jnp.maximum(h2, 0.0)

    # fc3 (padded class columns are zero weights + -1e30 bias)
    logits = jnp.dot(h2.astype(jnp.bfloat16), w3_ref[...],
                     preferred_element_type=jnp.float32) + b3

    # softmax over the (padded, lane-dense) class dimension
    m = jnp.max(logits, axis=-1, keepdims=True)
    e = jnp.exp(logits - m)
    denom = jnp.sum(e, axis=-1, keepdims=True)
    o_ref[...] = (e * pl.reciprocal(denom, approx=True)).astype(o_ref.dtype)


@functools.partial(jax.jit, static_argnames=("num_classes",))
def mlp_forward(x, params, num_classes):
    """x: (batch, pred_len, dec_in) float32 -> (batch, num_classes) float32."""
    w1, b1, w2, b2, w3, b3 = params
    batch, pred_len, dec_in = x.shape
    in_features = pred_len * dec_in
    hidden = w1.shape[1]

    # Equivalent of x.view(batch, pred_len * dec_in)
    x2d = x.reshape(batch, in_features)

    # --- lane-dense padding: hidden and classes both padded to a 128 multiple ---
    pad = max(_round_up(hidden, 128), _round_up(num_classes, 128))
    w1p = jnp.pad(w1, ((0, 0), (0, pad - hidden)))
    w2p = jnp.pad(w2, ((0, pad - hidden), (0, pad - hidden)))
    w3p = jnp.pad(w3, ((0, pad - hidden), (0, pad - num_classes)))
    b1p = jnp.pad(b1, (0, pad - hidden))
    b2p = jnp.pad(b2, (0, pad - hidden))
    b3p = jnp.pad(b3, (0, pad - num_classes), constant_values=-1e30)
    bcat = jnp.stack([b1p, b2p, b3p], axis=0).astype(jnp.float32)  # (3, pad)

    # bf16 for the MXU / DMA path; accumulation stays f32 in-kernel.
    w1b = w1p.astype(jnp.bfloat16)
    w2b = w2p.astype(jnp.bfloat16)
    w3b = w3p.astype(jnp.bfloat16)

    # --- batch tiling: sublane-aligned row blocks, weights un-gridded ---
    tb = 128 if batch >= 128 else _round_up(batch, 8)
    b_pad = _round_up(batch, tb)
    xb = jnp.pad(x2d, ((0, b_pad - batch), (0, 0))).astype(jnp.bfloat16)
    grid = (b_pad // tb,)

    flops = 2 * b_pad * (in_features * pad + pad * pad + pad * pad)
    bytes_accessed = (xb.size * 2 + (w1b.size + w2b.size + w3b.size) * 2
                      + bcat.size * 4 + b_pad * pad * 4)
    cost = pl.CostEstimate(flops=flops,
                           transcendentals=b_pad * pad,
                           bytes_accessed=bytes_accessed)

    out = pl.pallas_call(
        mlp_kernel,
        out_shape=jax.ShapeDtypeStruct((b_pad, pad), jnp.float32),
        grid=grid,
        in_specs=[
            pl.BlockSpec((tb, in_features), lambda i: (i, 0)),   # x tile
            pl.BlockSpec((in_features, pad), lambda i: (0, 0)),  # w1 (resident)
            pl.BlockSpec((pad, pad), lambda i: (0, 0)),          # w2 (resident)
            pl.BlockSpec((pad, pad), lambda i: (0, 0)),          # w3 (resident)
            pl.BlockSpec((3, pad), lambda i: (0, 0)),            # stacked biases
        ],
        out_specs=pl.BlockSpec((tb, pad), lambda i: (i, 0)),
        compiler_params=pltpu.CompilerParams(
            dimension_semantics=("parallel",),
            vmem_limit_bytes=64 * 1024 * 1024,
        ),
        cost_estimate=cost,
    )(xb, w1b, w2b, w3b, bcat)

    # Strip batch padding and padded (zero-probability) classes.
    return out[:batch, :num_classes]


def init_params(key, in_features, hidden, num_classes):
    """Deterministic synthetic parameters (shapes match the PyTorch module)."""
    k1, k2, k3, k4, k5, k6 = jax.random.split(key, 6)
    w1 = jax.random.normal(k1, (in_features, hidden), jnp.float32) * 0.05
    b1 = jax.random.normal(k2, (hidden,), jnp.float32) * 0.01
    w2 = jax.random.normal(k3, (hidden, hidden), jnp.float32) * 0.05
    b2 = jax.random.normal(k4, (hidden,), jnp.float32) * 0.01
    w3 = jax.random.normal(k5, (hidden, num_classes), jnp.float32) * 0.05
    b3 = jax.random.normal(k6, (num_classes,), jnp.float32) * 0.01
    return (w1, b1, w2, b2, w3, b3)


def reference_forward(x, params):
    """Plain-JAX f32 reference mirroring the PyTorch forward."""
    w1, b1, w2, b2, w3, b3 = params
    batch = x.shape[0]
    x2d = x.reshape(batch, -1)
    h1 = jnp.maximum(x2d @ w1 + b1, 0.0)
    h2 = jnp.maximum(h1 @ w2 + b2, 0.0)
    logits = h2 @ w3 + b3
    return jax.nn.softmax(logits, axis=1)


if __name__ == "__main__":
    # configs: pred_len=8, dec_in=4, num_classes=10  ->  in_features=32, hidden=64
    batch, pred_len, dec_in, hidden, num_classes = 2, 8, 4, 64, 10
    in_features = pred_len * dec_in

    key = jax.random.PRNGKey(0)
    kx, kp = jax.random.split(key)
    x = jax.random.normal(kx, (batch, pred_len, dec_in), jnp.float32)
    params = init_params(kp, in_features, hidden, num_classes)

    # Unused auxiliary inputs from the PyTorch signature (ignored by forward).
    x_mark_enc = jnp.zeros((batch, pred_len, 4), jnp.float32)
    x_dec = jnp.zeros((batch, pred_len, dec_in), jnp.float32)
    x_mark_dec = jnp.zeros((batch, pred_len, 4), jnp.float32)
    del x_mark_enc, x_dec, x_mark_dec

    out = mlp_forward(x, params, num_classes)
    out = jax.block_until_ready(out)

    ref = reference_forward(x, params)
    assert out.shape == (batch, num_classes)
    # bf16 matmul inputs + approx reciprocal => compare to f32 ref with loose tol.
    assert jnp.allclose(out, ref, atol=2e-2, rtol=2e-2)
    assert jnp.allclose(jnp.sum(out, axis=1), jnp.ones((batch,)), atol=5e-3)

    print("KERNEL_OK")
</pallas_src>

<mosaic_0001>
module attributes {stable_mosaic.version = 11 : i64} {
  func.func @mlp_kernel(%arg0: i32, %arg1: memref<8x32xbf16, #tpu.memory_space<vmem>>, %arg2: memref<32x128xbf16, #tpu.memory_space<vmem>>, %arg3: memref<128x128xbf16, #tpu.memory_space<vmem>>, %arg4: memref<128x128xbf16, #tpu.memory_space<vmem>>, %arg5: memref<3x128xf32, #tpu.memory_space<vmem>>, %arg6: memref<8x128xf32, #tpu.memory_space<vmem>>) attributes {dimension_semantics = [#tpu.dimension_semantics<parallel>], iteration_bounds = array<i64: 1>, scalar_prefetch = 0 : i64, scratch_operands = 0 : i64, tpu.core_type = #tpu.core_type<tc>, window_params = [{transform_indices = @transform_0, window_bounds = array<i64: 8, 32>}, {pipeline_mode = #tpu.pipeline_mode<synchronous>, transform_indices = @transform_1, window_bounds = array<i64: 32, 128>}, {pipeline_mode = #tpu.pipeline_mode<synchronous>, transform_indices = @transform_2, window_bounds = array<i64: 128, 128>}, {pipeline_mode = #tpu.pipeline_mode<synchronous>, transform_indices = @transform_3, window_bounds = array<i64: 128, 128>}, {pipeline_mode = #tpu.pipeline_mode<synchronous>, transform_indices = @transform_4, window_bounds = array<i64: 3, 128>}, {transform_indices = @transform_5, window_bounds = array<i64: 8, 128>}]} {
    %c0 = arith.constant 0 : index
    %c0_0 = arith.constant 0 : index
    %0 = vector.load %arg1[%c0, %c0_0] : memref<8x32xbf16, #tpu.memory_space<vmem>>, vector<8x32xbf16>
    %c0_1 = arith.constant 0 : index
    %c0_2 = arith.constant 0 : index
    %1 = vector.load %arg5[%c0_1, %c0_2] : memref<3x128xf32, #tpu.memory_space<vmem>>, vector<1x128xf32>
    %c1 = arith.constant 1 : index
    %c0_3 = arith.constant 0 : index
    %2 = vector.load %arg5[%c1, %c0_3] : memref<3x128xf32, #tpu.memory_space<vmem>>, vector<1x128xf32>
    %c2 = arith.constant 2 : index
    %c0_4 = arith.constant 0 : index
    %3 = vector.load %arg5[%c2, %c0_4] : memref<3x128xf32, #tpu.memory_space<vmem>>, vector<1x128xf32>
    %c0_5 = arith.constant 0 : index
    %c0_6 = arith.constant 0 : index
    %4 = vector.load %arg2[%c0_5, %c0_6] : memref<32x128xbf16, #tpu.memory_space<vmem>>, vector<32x128xbf16>
    %cst = arith.constant dense<0.000000e+00> : vector<8x128xf32>
    %5 = tpu.matmul %0, %4, %cst {dimension_numbers = #tpu.dot_dimension_numbers<[1], [0], [0], [1], [0, 0, 1, 1], [], []>} : vector<8x32xbf16>, vector<32x128xbf16>, vector<8x128xf32> -> vector<8x128xf32>
    %6 = vector.broadcast %1 : vector<1x128xf32> to vector<8x128xf32>
    %7 = arith.addf %5, %6 : vector<8x128xf32>
    %cst_7 = arith.constant 0.000000e+00 : f32
    %8 = vector.broadcast %cst_7 : f32 to vector<8x128xf32>
    %9 = arith.maximumf %7, %8 : vector<8x128xf32>
    %10 = arith.truncf %9 : vector<8x128xf32> to vector<8x128xbf16>
    %c0_8 = arith.constant 0 : index
    %c0_9 = arith.constant 0 : index
    %11 = vector.load %arg3[%c0_8, %c0_9] : memref<128x128xbf16, #tpu.memory_space<vmem>>, vector<128x128xbf16>
    %cst_10 = arith.constant dense<0.000000e+00> : vector<8x128xf32>
    %12 = tpu.matmul %10, %11, %cst_10 {dimension_numbers = #tpu.dot_dimension_numbers<[1], [0], [0], [1], [0, 0, 1, 1], [], []>} : vector<8x128xbf16>, vector<128x128xbf16>, vector<8x128xf32> -> vector<8x128xf32>
    %13 = vector.broadcast %2 : vector<1x128xf32> to vector<8x128xf32>
    %14 = arith.addf %12, %13 : vector<8x128xf32>
    %cst_11 = arith.constant 0.000000e+00 : f32
    %15 = vector.broadcast %cst_11 : f32 to vector<8x128xf32>
    %16 = arith.maximumf %14, %15 : vector<8x128xf32>
    %17 = arith.truncf %16 : vector<8x128xf32> to vector<8x128xbf16>
    %c0_12 = arith.constant 0 : index
    %c0_13 = arith.constant 0 : index
    %18 = vector.load %arg4[%c0_12, %c0_13] : memref<128x128xbf16, #tpu.memory_space<vmem>>, vector<128x128xbf16>
    %cst_14 = arith.constant dense<0.000000e+00> : vector<8x128xf32>
    %19 = tpu.matmul %17, %18, %cst_14 {dimension_numbers = #tpu.dot_dimension_numbers<[1], [0], [0], [1], [0, 0, 1, 1], [], []>} : vector<8x128xbf16>, vector<128x128xbf16>, vector<8x128xf32> -> vector<8x128xf32>
    %20 = vector.broadcast %3 : vector<1x128xf32> to vector<8x128xf32>
    %21 = arith.addf %19, %20 : vector<8x128xf32>
    %cst_15 = arith.constant dense<0xFF800000> : vector<8xf32>
    %22 = vector.multi_reduction <maximumf>, %21, %cst_15 [1] : vector<8x128xf32> to vector<8xf32>
    %23 = vector.shape_cast %22 : vector<8xf32> to vector<8x1xf32>
    %24 = vector.broadcast %23 : vector<8x1xf32> to vector<8x128xf32>
    %25 = arith.subf %21, %24 : vector<8x128xf32>
    %26 = math.exp %25 : vector<8x128xf32>
    %cst_16 = arith.constant dense<0.000000e+00> : vector<8xf32>
    %27 = vector.multi_reduction <add>, %26, %cst_16 [1] : vector<8x128xf32> to vector<8xf32>
    %28 = vector.shape_cast %27 : vector<8xf32> to vector<8x1xf32>
    %29 = tpu.reciprocal %28 {approx = true} : vector<8x1xf32> -> vector<8x1xf32>
    %30 = vector.broadcast %29 : vector<8x1xf32> to vector<8x128xf32>
    %31 = arith.mulf %26, %30 : vector<8x128xf32>
    %c0_17 = arith.constant 0 : index
    %c0_18 = arith.constant 0 : index
    %32 = vector.load %arg6[%c0_17, %c0_18] : memref<8x128xf32, #tpu.memory_space<vmem>>, vector<8x128xf32>
    tpu.vector_store %arg6[%c0_17, %c0_18], %31 {strides = array<i32>} : memref<8x128xf32, #tpu.memory_space<vmem>>, vector<8x128xf32>,
    return
  }
  func.func @transform_0(%arg0: i32) -> (i32, i32) {
    %c0_i32 = arith.constant 0 : i32
    %c0_i32_0 = arith.constant 0 : i32
    return %arg0, %c0_i32 : i32, i32
  }
  func.func @transform_1(%arg0: i32) -> (i32, i32) {
    %c0_i32 = arith.constant 0 : i32
    %c0_i32_0 = arith.constant 0 : i32
    %c0_i32_1 = arith.constant 0 : i32
    return %c0_i32, %c0_i32_0 : i32, i32
  }
  func.func @transform_2(%arg0: i32) -> (i32, i32) {
    %c0_i32 = arith.constant 0 : i32
    %c0_i32_0 = arith.constant 0 : i32
    %c0_i32_1 = arith.constant 0 : i32
    return %c0_i32, %c0_i32_0 : i32, i32
  }
  func.func @transform_3(%arg0: i32) -> (i32, i32) {
    %c0_i32 = arith.constant 0 : i32
    %c0_i32_0 = arith.constant 0 : i32
    %c0_i32_1 = arith.constant 0 : i32
    return %c0_i32, %c0_i32_0 : i32, i32
  }
  func.func @transform_4(%arg0: i32) -> (i32, i32) {
    %c0_i32 = arith.constant 0 : i32
    %c0_i32_0 = arith.constant 0 : i32
    %c0_i32_1 = arith.constant 0 : i32
    return %c0_i32, %c0_i32_0 : i32, i32
  }
  func.func @transform_5(%arg0: i32) -> (i32, i32) {
    %c0_i32 = arith.constant 0 : i32
    %c0_i32_0 = arith.constant 0 : i32
    return %arg0, %c0_i32 : i32, i32
  }
}

</mosaic_0001>

<llo_original>
// kernel: mlp_forward.1
$region0: #{mlp_forward.1}
  #allocation0 [shape = 'u32[]', space=smem, size = 0x4, offset = 0x4, fixed_abs, tag = 'smem constant byte address 0x4 - core index']
  #allocation1 [shape = 'u32[144,128]{1,0:T(1,128)}', space=vmem, size = 0x12000, scoped, tag = 'internal scratch']
  %s0 = inlined_call_operand.hbm [shape: bf16[8,32], index: 0, kind: input, shape index: {}]
  %s1 = inlined_call_operand.hbm [shape: bf16[32,128], index: 1, kind: input, shape index: {}]
  %s2 = inlined_call_operand.hbm [shape: bf16[128,128], index: 2, kind: input, shape index: {}]
  %s3 = inlined_call_operand.hbm [shape: bf16[128,128], index: 3, kind: input, shape index: {}]
  %s4 = inlined_call_operand.hbm [shape: f32[3,128], index: 4, kind: input, shape index: {}]
  %s5 = inlined_call_operand.hbm [shape: f32[8,128], index: 5, kind: output, shape index: {}]
  %s6 = sld [smem:[#allocation0]]
  $region50: #{mlp_forward.1} parent=0
    _
  %s8 = ssub.s32 1, %s6
  %s9 = scalar_select 0, %s8, %s6
  $region1: #{mlp_forward.1} parent=0
    #allocation2 [shape = 'u8[2048]{0}', space=vmem, size = 0x800, scoped, tag = 'input window, operand 0, single buffered']
    #allocation3 [shape = 's32[1]{0}', space=sflag, size = 0x4, scoped, tag = 'scoped memory for mlp_forward.1']
    #allocation4 [shape = 's32[1]{0}', space=sflag, size = 0x4, scoped, tag = 'scoped memory for mlp_forward.1']
    #allocation5 [shape = 'u8[8192]{0}', space=vmem, size = 0x2000, scoped, tag = 'input window, operand 1, single buffered']
    #allocation6 [shape = 's32[1]{0}', space=sflag, size = 0x4, scoped, tag = 'scoped memory for mlp_forward.1']
    #allocation7 [shape = 'u8[32768]{0}', space=vmem, size = 0x8000, scoped, tag = 'input window, operand 2, single buffered']
    #allocation8 [shape = 'u8[32768]{0}', space=vmem, size = 0x8000, scoped, tag = 'input window, operand 3, single buffered']
    #allocation9 [shape = 's32[1]{0}', space=sflag, size = 0x4, scoped, tag = 'scoped memory for mlp_forward.1']
    #allocation10 [shape = 'u8[2048]{0}', space=vmem, size = 0x800, scoped, tag = 'input window, operand 4, single buffered']
    #allocation11 [shape = 'u8[4096]{0}', space=vmem, size = 0x1000, scoped, tag = 'output window, operand 0, single buffered']
    %10 = vsyncpa [#allocation3], 0
    %11 = vsyncpa [#allocation6], 0
    %12 = vsyncpa [#allocation9], 0
    %13 = vsyncpa [#allocation4], 0
    // Predicated region
    $region2: #{mlp_forward.1} parent=1 // pred_check
      _
    $region3: #{mlp_forward.1} parent=1 // pred_check_branch
      %15 = sbr.rel (0) target = $region5
    $region4: #{mlp_forward.1} parent=1 // pred_region
      %s17 = ssub.s32 64, 64
      %18 = vsyncadd [#allocation3], %s17
      %s20 = sshll.u32 [#allocation2], 4
      %s21 = int_to_ptr.vmem [resolvable:$true] %s20
      %23 = dma.hbm_to_vmem [thread:$0]  %s0, 64, %s21, [#allocation3]
    $region5: #{mlp_forward.1} parent=1 // pred_fallthru
      _
    // Predicated region
    $region6: #{mlp_forward.1} parent=1 // pred_check
      _
    $region7: #{mlp_forward.1} parent=1 // pred_check_branch
      %25 = sbr.rel (0) target = $region9
    $region8: #{mlp_forward.1} parent=1 // pred_region
      %s27 = ssub.s32 256, 256
      %28 = vsyncadd [#allocation6], %s27
      %s29 = sshll.u32 [#allocation5], 4
      %s30 = int_to_ptr.vmem [resolvable:$true] %s29
      %35 = dma.hbm_to_vmem [thread:$0]  %s1, 256, %s30, [#allocation6], 64, 64, 4
    $region9: #{mlp_forward.1} parent=1 // pred_fallthru
      _
    // Predicated region
    $region10: #{mlp_forward.1} parent=1 // pred_check
      _
    $region11: #{mlp_forward.1} parent=1 // pred_check_branch
      %37 = sbr.rel (0) target = $region13
    $region12: #{mlp_forward.1} parent=1 // pred_region
      %s39 = ssub.s32 1024, 1024
      %40 = vsyncadd [#allocation6], %s39
      %s41 = sshll.u32 [#allocation7], 4
      %s42 = int_to_ptr.vmem [resolvable:$true] %s41
      %47 = dma.hbm_to_vmem [thread:$0]  %s2, 1024, %s42, [#allocation6], 64, 64, 4
    $region13: #{mlp_forward.1} parent=1 // pred_fallthru
      _
    // Predicated region
    $region14: #{mlp_forward.1} parent=1 // pred_check
      _
    $region15: #{mlp_forward.1} parent=1 // pred_check_branch
      %49 = sbr.rel (0) target = $region17
    $region16: #{mlp_forward.1} parent=1 // pred_region
      %s51 = ssub.s32 1024, 1024
      %52 = vsyncadd [#allocation9], %s51
      %s53 = sshll.u32 [#allocation8], 4
      %s54 = int_to_ptr.vmem [resolvable:$true] %s53
      %59 = dma.hbm_to_vmem [thread:$0]  %s3, 1024, %s54, [#allocation9], 64, 64, 4
    $region17: #{mlp_forward.1} parent=1 // pred_fallthru
      _
    // Predicated region
    $region18: #{mlp_forward.1} parent=1 // pred_check
      _
    $region19: #{mlp_forward.1} parent=1 // pred_check_branch
      %61 = sbr.rel (0) target = $region21
    $region20: #{mlp_forward.1} parent=1 // pred_region
      %s63 = ssub.s32 64, 64
      %64 = vsyncadd [#allocation9], %s63
      %s66 = sshll.u32 [#allocation10], 4
      %s67 = int_to_ptr.vmem [resolvable:$true] %s66
      %69 = dma.hbm_to_vmem [thread:$0]  %s4, 64, %s67, [#allocation9]
    $region21: #{mlp_forward.1} parent=1 // pred_fallthru
      _
    // Predicated region
    $region22: #{mlp_forward.1} parent=1 // pred_check
      _
    $region23: #{mlp_forward.1} parent=1 // pred_check_branch
      %71 = sbr.rel (0) target = $region25
    $region24: #{mlp_forward.1} parent=1 // pred_region
      %72 = dma.done [#allocation3], 64
    $region25: #{mlp_forward.1} parent=1 // pred_fallthru
      _
    // Predicated region
    $region26: #{mlp_forward.1} parent=1 // pred_check
      _
    $region27: #{mlp_forward.1} parent=1 // pred_check_branch
      %74 = sbr.rel (0) target = $region29
    $region28: #{mlp_forward.1} parent=1 // pred_region
      %75 = dma.done [#allocation6], 256
    $region29: #{mlp_forward.1} parent=1 // pred_fallthru
      _
    // Predicated region
    $region30: #{mlp_forward.1} parent=1 // pred_check
      _
    $region31: #{mlp_forward.1} parent=1 // pred_check_branch
      %77 = sbr.rel (0) target = $region33
    $region32: #{mlp_forward.1} parent=1 // pred_region
      %78 = dma.done [#allocation6], 1024
    $region33: #{mlp_forward.1} parent=1 // pred_fallthru
      _
    // Predicated region
    $region34: #{mlp_forward.1} parent=1 // pred_check
      _
    $region35: #{mlp_forward.1} parent=1 // pred_check_branch
      %80 = sbr.rel (0) target = $region37
    $region36: #{mlp_forward.1} parent=1 // pred_region
      %81 = dma.done [#allocation9], 1024
    $region37: #{mlp_forward.1} parent=1 // pred_fallthru
      _
    // Predicated region
    $region38: #{mlp_forward.1} parent=1 // pred_check
      _
    $region39: #{mlp_forward.1} parent=1 // pred_check_branch
      %83 = sbr.rel (0) target = $region41
    $region40: #{mlp_forward.1} parent=1 // pred_region
      %84 = dma.done [#allocation9], 64
    $region41: #{mlp_forward.1} parent=1 // pred_fallthru
      _
    %v86 = vld [vmem:[#allocation2] sm:$0xf]
    %v87 = vld [vmem:[#allocation10] sm:$0x1]
    %v88 = vld [vmem:[#allocation10 + $0x1] sm:$0x1]
    %v89 = vld [vmem:[#allocation10 + $0x2] sm:$0x1]
    %v90 = vld [vmem:[#allocation5] sm:$0xf]
    %v91 = vld [vmem:[#allocation5 + $0x4] sm:$0xf]
    %v92 = vld [vmem:[#allocation5 + $0x8] sm:$0xf]
    %v93 = vld [vmem:[#allocation5 + $0xc] sm:$0xf]
    %v94 = vlaneseq
    %v95 = vshrl.u32 %v94, 7
    %v96 = vsub.s32 0, %v95
    %v97 = vrot.slane %v87, %v96
    %v102 = vunpack.c.l.b16 %v90
    %v103 = vunpack.c.l.b16 %v91
    %v104 = vunpack.c.l.b16 %v92
    %v105 = vunpack.c.l.b16 %v93
    %v106 = vpack.c.b16 %v103, %v102
    %v107 = vpack.c.b16 %v105, %v104
    %vm110 = vcmask 261120
    %v112 = vsel %vm110, %v86, 0
    %114 = vmatprep.subr.bf16.mxu0 0
    %115 = vmatpush1.bf16.msra.mxu0 %v106
    %116 = vmatprep.subr.bf16.mxu0 0
    %117 = vmatpush1.bf16.msra.mxu0 %v107
    %118 = vmatprep.subr.bf16.mxu0 0
    %119 = vmatpush1.bf16.msra.mxu0 0
    %120 = vmatprep.subr.bf16.mxu0 0
    %121 = vmatpush1.bf16.msra.mxu0 0
    %122 = vmatprep.subr.bf16.mxu0 0
    %123 = vmatpush1.bf16.msra.mxu0 0
    %124 = vmatprep.subr.bf16.mxu0 0
    %125 = vmatpush1.bf16.msra.mxu0 0
    %126 = vmatprep.subr.bf16.mxu0 0
    %127 = vmatpush1.bf16.msra.mxu0 0
    %128 = vmatprep.subr.bf16.mxu0 0
    %129 = vmatpush1.bf16.msra.mxu0 0
    %130 = vmatprep.subr.bf16.mxu0 0
    %131 = vmatpush1.bf16.msra.mxu0 0
    %132 = vmatprep.subr.bf16.mxu0 0
    %133 = vmatpush1.bf16.msra.mxu0 0
    %134 = vmatprep.subr.bf16.mxu0 0
    %135 = vmatpush1.bf16.msra.mxu0 0
    %136 = vmatprep.subr.bf16.mxu0 0
    %137 = vmatpush1.bf16.msra.mxu0 0
    %138 = vmatprep.subr.bf16.mxu0 0
    %139 = vmatpush1.bf16.msra.mxu0 0
    %140 = vmatprep.subr.bf16.mxu0 0
    %141 = vmatpush1.bf16.msra.mxu0 0
    %142 = vmatprep.subr.bf16.mxu0 0
    %143 = vmatpush1.bf16.msra.mxu0 0
    %144 = vmatprep.subr.bf16.mxu0 0
    %145 = vmatpush1.bf16.msra.mxu0 0
    %146 = vmatprep.mubr.bf16.mxu0 0
    %147 = vmatmul.mubr.bf16.gmra.mrb[0].mxu0 %v112
    %v148 = vpop.f32.mrb[0].mxu0
    %v149 = vadd.f32 %v97, %v148
    %v150 = vpop.f32.mrb[0].mxu0
    %v151 = vpop.f32.mrb[0].mxu0
    %v152 = vpop.f32.mrb[0].mxu0
    %153 = vdwg.mxu0
    %v154 = vmax.f32 %v149, 0.0
    %v155 = vpack.c.bf16 %v154, %v154
    %v156 = vld [vmem:[#allocation7] sm:$0xf]
    %v157 = vld [vmem:[#allocation7 + $0x4] sm:$0xf]
    %v158 = vld [vmem:[#allocation7 + $0x8] sm:$0xf]
    %v159 = vld [vmem:[#allocation7 + $0xc] sm:$0xf]
    %v160 = vld [vmem:[#allocation7 + $0x10] sm:$0xf]
    %v161 = vld [vmem:[#allocation7 + $0x14] sm:$0xf]
    %v162 = vld [vmem:[#allocation7 + $0x18] sm:$0xf]
    %v163 = vld [vmem:[#allocation7 + $0x1c] sm:$0xf]
    %v164 = vld [vmem:[#allocation7 + $0x20] sm:$0xf]
    %v165 = vld [vmem:[#allocation7 + $0x24] sm:$0xf]
    %v166 = vld [vmem:[#allocation7 + $0x28] sm:$0xf]
    %v167 = vld [vmem:[#allocation7 + $0x2c] sm:$0xf]
    %v168 = vld [vmem:[#allocation7 + $0x30] sm:$0xf]
    %v169 = vld [vmem:[#allocation7 + $0x34] sm:$0xf]
    %v170 = vld [vmem:[#allocation7 + $0x38] sm:$0xf]
    %v171 = vld [vmem:[#allocation7 + $0x3c] sm:$0xf]
    %v172 = vlaneseq
    %v173 = vshrl.u32 %v172, 7
    %v174 = vsub.s32 0, %v173
    %v175 = vrot.slane %v88, %v174
    %v192 = vunpack.c.l.b16 %v156
    %v193 = vunpack.c.l.b16 %v157
    %v194 = vunpack.c.l.b16 %v158
    %v195 = vunpack.c.l.b16 %v159
    %v196 = vunpack.c.l.b16 %v160
    %v197 = vunpack.c.l.b16 %v161
    %v198 = vunpack.c.l.b16 %v162
    %v199 = vunpack.c.l.b16 %v163
    %v200 = vunpack.c.l.b16 %v164
    %v201 = vunpack.c.l.b16 %v165
    %v202 = vunpack.c.l.b16 %v166
    %v203 = vunpack.c.l.b16 %v167
    %v204 = vunpack.c.l.b16 %v168
    %v205 = vunpack.c.l.b16 %v169
    %v206 = vunpack.c.l.b16 %v170
    %v207 = vunpack.c.l.b16 %v171
    %v208 = vpack.c.b16 %v193, %v192
    %v209 = vpack.c.b16 %v195, %v194
    %v210 = vpack.c.b16 %v197, %v196
    %v211 = vpack.c.b16 %v199, %v198
    %v212 = vpack.c.b16 %v201, %v200
    %v213 = vpack.c.b16 %v203, %v202
    %v214 = vpack.c.b16 %v205, %v204
    %v215 = vpack.c.b16 %v207, %v206
    %224 = vmatprep.subr.bf16.mxu0 0
    %225 = vmatpush1.bf16.msra.mxu0 %v208
    %226 = vmatprep.subr.bf16.mxu0 0
    %227 = vmatpush1.bf16.msra.mxu0 %v209
    %228 = vmatprep.subr.bf16.mxu0 0
    %229 = vmatpush1.bf16.msra.mxu0 %v210
    %230 = vmatprep.subr.bf16.mxu0 0
    %231 = vmatpush1.bf16.msra.mxu0 %v211
    %232 = vmatprep.subr.bf16.mxu0 0
    %233 = vmatpush1.bf16.msra.mxu0 %v212
    %234 = vmatprep.subr.bf16.mxu0 0
    %235 = vmatpush1.bf16.msra.mxu0 %v213
    %236 = vmatprep.subr.bf16.mxu0 0
    %237 = vmatpush1.bf16.msra.mxu0 %v214
    %238 = vmatprep.subr.bf16.mxu0 0
    %239 = vmatpush1.bf16.msra.mxu0 %v215
    %240 = vmatprep.subr.bf16.mxu0 0
    %241 = vmatpush1.bf16.msra.mxu0 0
    %242 = vmatprep.subr.bf16.mxu0 0
    %243 = vmatpush1.bf16.msra.mxu0 0
    %244 = vmatprep.subr.bf16.mxu0 0
    %245 = vmatpush1.bf16.msra.mxu0 0
    %246 = vmatprep.subr.bf16.mxu0 0
    %247 = vmatpush1.bf16.msra.mxu0 0
    %248 = vmatprep.subr.bf16.mxu0 0
    %249 = vmatpush1.bf16.msra.mxu0 0
    %250 = vmatprep.subr.bf16.mxu0 0
    %251 = vmatpush1.bf16.msra.mxu0 0
    %252 = vmatprep.subr.bf16.mxu0 0
    %253 = vmatpush1.bf16.msra.mxu0 0
    %254 = vmatprep.subr.bf16.mxu0 0
    %255 = vmatpush1.bf16.msra.mxu0 0
    %256 = vmatprep.mubr.bf16.mxu0 0
    %257 = vmatmul.mubr.bf16.gmra.mrb[0].mxu0 %v155
    %v258 = vpop.f32.mrb[0].mxu0
    %v259 = vadd.f32 %v175, %v258
    %v260 = vpop.f32.mrb[0].mxu0
    %v261 = vpop.f32.mrb[0].mxu0
    %v262 = vpop.f32.mrb[0].mxu0
    %263 = vdwg.mxu0
    %v264 = vmax.f32 %v259, 0.0
    %v265 = vpack.c.bf16 %v264, %v264
    %v266 = vld [vmem:[#allocation8] sm:$0xf]
    %v267 = vld [vmem:[#allocation8 + $0x4] sm:$0xf]
    %v268 = vld [vmem:[#allocation8 + $0x8] sm:$0xf]
    %v269 = vld [vmem:[#allocation8 + $0xc] sm:$0xf]
    %v270 = vld [vmem:[#allocation8 + $0x10] sm:$0xf]
    %v271 = vld [vmem:[#allocation8 + $0x14] sm:$0xf]
    %v272 = vld [vmem:[#allocation8 + $0x18] sm:$0xf]
    %v273 = vld [vmem:[#allocation8 + $0x1c] sm:$0xf]
    %v274 = vld [vmem:[#allocation8 + $0x20] sm:$0xf]
    %v275 = vld [vmem:[#allocation8 + $0x24] sm:$0xf]
    %v276 = vld [vmem:[#allocation8 + $0x28] sm:$0xf]
    %v277 = vld [vmem:[#allocation8 + $0x2c] sm:$0xf]
    %v278 = vld [vmem:[#allocation8 + $0x30] sm:$0xf]
    %v279 = vld [vmem:[#allocation8 + $0x34] sm:$0xf]
    %v280 = vld [vmem:[#allocation8 + $0x38] sm:$0xf]
    %v281 = vld [vmem:[#allocation8 + $0x3c] sm:$0xf]
    %v282 = vlaneseq
    %v283 = vshrl.u32 %v282, 7
    %v284 = vsub.s32 0, %v283
    %v285 = vrot.slane %v89, %v284
    %v302 = vunpack.c.l.b16 %v266
    %v303 = vunpack.c.l.b16 %v267
    %v304 = vunpack.c.l.b16 %v268
    %v305 = vunpack.c.l.b16 %v269
    %v306 = vunpack.c.l.b16 %v270
    %v307 = vunpack.c.l.b16 %v271
    %v308 = vunpack.c.l.b16 %v272
    %v309 = vunpack.c.l.b16 %v273
    %v310 = vunpack.c.l.b16 %v274
    %v311 = vunpack.c.l.b16 %v275
    %v312 = vunpack.c.l.b16 %v276
    %v313 = vunpack.c.l.b16 %v277
    %v314 = vunpack.c.l.b16 %v278
    %v315 = vunpack.c.l.b16 %v279
    %v316 = vunpack.c.l.b16 %v280
    %v317 = vunpack.c.l.b16 %v281
    %v318 = vpack.c.b16 %v303, %v302
    %v319 = vpack.c.b16 %v305, %v304
    %v320 = vpack.c.b16 %v307, %v306
    %v321 = vpack.c.b16 %v309, %v308
    %v322 = vpack.c.b16 %v311, %v310
    %v323 = vpack.c.b16 %v313, %v312
    %v324 = vpack.c.b16 %v315, %v314
    %v325 = vpack.c.b16 %v317, %v316
    %334 = vmatprep.subr.bf16.mxu0 0
    %335 = vmatpush1.bf16.msra.mxu0 %v318
    %336 = vmatprep.subr.bf16.mxu0 0
    %337 = vmatpush1.bf16.msra.mxu0 %v319
    %338 = vmatprep.subr.bf16.mxu0 0
    %339 = vmatpush1.bf16.msra.mxu0 %v320
    %340 = vmatprep.subr.bf16.mxu0 0
    %341 = vmatpush1.bf16.msra.mxu0 %v321
    %342 = vmatprep.subr.bf16.mxu0 0
    %343 = vmatpush1.bf16.msra.mxu0 %v322
    %344 = vmatprep.subr.bf16.mxu0 0
    %345 = vmatpush1.bf16.msra.mxu0 %v323
    %346 = vmatprep.subr.bf16.mxu0 0
    %347 = vmatpush1.bf16.msra.mxu0 %v324
    %348 = vmatprep.subr.bf16.mxu0 0
    %349 = vmatpush1.bf16.msra.mxu0 %v325
    %350 = vmatprep.subr.bf16.mxu0 0
    %351 = vmatpush1.bf16.msra.mxu0 0
    %352 = vmatprep.subr.bf16.mxu0 0
    %353 = vmatpush1.bf16.msra.mxu0 0
    %354 = vmatprep.subr.bf16.mxu0 0
    %355 = vmatpush1.bf16.msra.mxu0 0
    %356 = vmatprep.subr.bf16.mxu0 0
    %357 = vmatpush1.bf16.msra.mxu0 0
    %358 = vmatprep.subr.bf16.mxu0 0
    %359 = vmatpush1.bf16.msra.mxu0 0
    %360 = vmatprep.subr.bf16.mxu0 0
    %361 = vmatpush1.bf16.msra.mxu0 0
    %362 = vmatprep.subr.bf16.mxu0 0
    %363 = vmatpush1.bf16.msra.mxu0 0
    %364 = vmatprep.subr.bf16.mxu0 0
    %365 = vmatpush1.bf16.msra.mxu0 0
    %366 = vmatprep.mubr.bf16.mxu0 0
    %367 = vmatmul.mubr.bf16.gmra.mrb[0].mxu0 %v265
    %v368 = vpop.f32.mrb[0].mxu0
    %v369 = vadd.f32 %v285, %v368
    %v370 = vpop.f32.mrb[0].mxu0
    %v371 = vpop.f32.mrb[0].mxu0
    %v372 = vpop.f32.mrb[0].mxu0
    %373 = vdwg.mxu0
    %374 = vmax.xlane.f32.xlu0 %v369
    %v375 = vpop.xlane.xlu0 %374
    %v376 = vsub.f32 %v369, %v375
    %v377 = vmul.f32 %v376, 1.442695
    %v378 = vpow.pop %v377
    %379 = vadd.xlane.f32.xlu0 %v378
    %v380 = vpop.xlane.xlu0 %379
    %v381 = vrcp.pop %v380
    %v382 = vmul.f32 %v378, %v381
    %383 = vst [vmem:[#allocation11] sm:$0xff] %v382
    // Predicated region
    $region42: #{mlp_forward.1} parent=1 // pred_check
      _
    $region43: #{mlp_forward.1} parent=1 // pred_check_branch
      %385 = sbr.rel (0) target = $region45
    $region44: #{mlp_forward.1} parent=1 // pred_region
      %s387 = ssub.s32 128, 128
      %388 = vsyncadd [#allocation4], %s387
      %s390 = sshll.u32 [#allocation11], 4
      %s391 = int_to_ptr.vmem [resolvable:$true] %s390
      %393 = dma.vmem_to_hbm [thread:$0]  %s391, 128, %s5, [#allocation4]
    $region45: #{mlp_forward.1} parent=1 // pred_fallthru
      _
    // Predicated region
    $region46: #{mlp_forward.1} parent=1 // pred_check
      _
    $region47: #{mlp_forward.1} parent=1 // pred_check_branch
      %395 = sbr.rel (0) target = $region49
    $region48: #{mlp_forward.1} parent=1 // pred_region
      %396 = dma.done [#allocation4], 128
    $region49: #{mlp_forward.1} parent=1 // pred_fallthru
      _
    %397 = vsyncpa [#allocation3], 1
    %398 = vsyncpa [#allocation6], 1
    %399 = vsyncpa [#allocation9], 1
    %400 = vsyncpa [#allocation4], 1

</llo_original>
